<compile_context>
chip_gen: v7x
topology: tpu7x:2x2x1
jax: 0.10.0
libtpu: 0.0.40
codegen_flags: <defaults>
</compile_context>

<pallas_src>
import functools

import jax
import jax.numpy as jnp
from jax.experimental import pallas as pl
from jax.experimental.pallas import tpu as pltpu


def _round_up(x, m):
    return ((x + m - 1) // m) * m


def _morphable_kernel(coeffs_ref, basis_ref, mean_ref, out_ref):
    # coeffs_ref: (TM, C)  basis_ref: (C, TN)  mean_ref: (1, TN)  out_ref: (TM, TN)
    prod = jnp.dot(
        coeffs_ref[...], basis_ref[...], preferred_element_type=jnp.float32
    )
    out_ref[...] = (prod + mean_ref[...]).astype(out_ref.dtype)


def prepare_morphable(mean, basis, basis_dtype=jnp.bfloat16):
    """One-time (model-build) prep; keep this OUT of the per-call hot path.

    mean: (V, K) f32, basis: (C, V, K) f32.
    Returns the flattened mean (1, V*K) f32, the basis flattened to
    (C_pad, V*K) in `basis_dtype` with C zero-padded to a multiple of 8, plus
    static shape info for the forward pass.

    NOTE: basis_dtype=jnp.bfloat16 (default) trades ~1e-2 relative accuracy for
    ~2x less HBM traffic; use jnp.float32 for exact module numerics.
    """
    C, V, K = basis.shape
    assert mean.shape == (V, K)
    N = V * K
    C_pad = _round_up(max(C, 1), 8)
    basis_flat = jnp.asarray(basis, jnp.float32).reshape(C, N)
    if C_pad != C:
        basis_flat = jnp.pad(basis_flat, ((0, C_pad - C), (0, 0)))
    basis_flat = basis_flat.astype(basis_dtype)
    mean_flat = jnp.asarray(mean, jnp.float32).reshape(1, N)
    return dict(mean=mean_flat, basis=basis_flat, V=V, K=K, C=C)


@functools.partial(jax.jit, static_argnames=("V", "K", "C", "tile_n", "tile_m"))
def _morphable_forward_impl(coeffs, mean_flat, basis_flat, *, V, K, C,
                            tile_n, tile_m):
    F, C_in = coeffs.shape
    C_pad, N = basis_flat.shape
    assert C_in == C and N == V * K

    # Tiny per-call prep only: zero-pad the contraction dim to match the
    # prepared basis and cast coeffs to the basis dtype (homogeneous MXU
    # matmul) when the basis is stored in reduced precision.
    if C_pad != C:
        coeffs = jnp.pad(coeffs, ((0, 0), (0, C_pad - C)))
    if basis_flat.dtype != jnp.float32:
        coeffs = coeffs.astype(basis_flat.dtype)

    basis_bytes = basis_flat.dtype.itemsize
    coeff_bytes = coeffs.dtype.itemsize

    # Lane-dense N tiles; frame tiles at the f32 sublane granularity (8).
    TN = min(_round_up(tile_n, 128), _round_up(N, 128))
    TM = min(_round_up(tile_m, 8), _round_up(F, 8))

    # Double-buffered streamed operands + output tile.
    def est_vmem(tm, tn):
        return (2 * C_pad * tn * basis_bytes      # basis
                + 2 * tm * C_pad * coeff_bytes    # coeffs
                + 2 * tn * 4                      # mean
                + 2 * tm * tn * 4)                # output

    try:
        vmem_cap = int(pltpu.get_tpu_info().vmem_capacity_bytes)
    except Exception:
        vmem_cap = 64 << 20  # conservative (v7x) if the query is unavailable
    budget = (vmem_cap * 3) // 4      # leave headroom for Mosaic scratch
    headroom = 4 << 20
    while est_vmem(TM, TN) + headroom > budget and TN > 512:
        TN = max(512, _round_up(TN // 2, 128))
    while est_vmem(TM, TN) + headroom > budget and TM > 8:
        TM = max(8, _round_up(TM // 2, 8))
    vmem_limit = int(min(est_vmem(TM, TN) + headroom, budget))

    n_tiles = pl.cdiv(N, TN)
    f_tiles = pl.cdiv(F, TM)
    grid = (n_tiles, f_tiles)  # N outer ("parallel"), frames inner

    cost = pl.CostEstimate(
        flops=2 * F * C_pad * N + F * N,
        transcendentals=0,
        bytes_accessed=(C_pad * N * basis_bytes           # basis streamed once
                        + n_tiles * F * C_pad * coeff_bytes
                        + N * 4
                        + F * N * 4),
    )

    out_flat = pl.pallas_call(
        _morphable_kernel,
        out_shape=jax.ShapeDtypeStruct((F, N), jnp.float32),
        grid_spec=pltpu.PrefetchScalarGridSpec(
            num_scalar_prefetch=0,
            grid=grid,
            in_specs=[
                # coeffs: depends only on the inner (frame) index.
                pl.BlockSpec((TM, C_pad), lambda i, j: (j, 0)),
                # basis/mean: constant across the inner loop -> DMA'd from HBM
                # exactly once per N tile.
                pl.BlockSpec((C_pad, TN), lambda i, j: (0, i)),
                pl.BlockSpec((1, TN), lambda i, j: (0, i)),
            ],
            out_specs=pl.BlockSpec((TM, TN), lambda i, j: (j, i)),
        ),
        compiler_params=pltpu.CompilerParams(
            # N axis parallel: megacore (v7x) splits the basis stream, keeping
            # total basis HBM reads at 1x; frame axis is the serial inner loop.
            dimension_semantics=("parallel", "arbitrary"),
            vmem_limit_bytes=vmem_limit,
        ),
        cost_estimate=cost,
    )(coeffs, basis_flat, mean_flat)

    # Exact-shape output: no padded tail to slice; reshape is free.
    return out_flat.reshape(F, V, K)


def morphable_forward(coeffs, prepared, *, tile_n=8192, tile_m=256):
    """coeffs: (F, C); prepared: output of prepare_morphable -> (F, V, 3)."""
    return _morphable_forward_impl(
        coeffs, prepared["mean"], prepared["basis"],
        V=prepared["V"], K=prepared["K"], C=prepared["C"],
        tile_n=tile_n, tile_m=tile_m)


def build_morphable_params(key, V=16, K=3, n_shape=4, n_expr=4):
    """Deterministically synthesize MorphableBase buffers and replicate
    Morphable.__init__ (shape=True, expression=True) in plain JAX."""
    ks = jax.random.split(key, 6)
    shape_mean = jax.random.normal(ks[0], (V, K), jnp.float32)
    shape_basis = jax.random.normal(ks[1], (V, K, n_shape), jnp.float32)
    shape_std = jax.random.uniform(ks[2], (n_shape,), jnp.float32, 0.5, 1.5)
    expr_mean = jax.random.normal(ks[3], (V, K), jnp.float32)
    expr_basis = jax.random.normal(ks[4], (V, K, n_expr), jnp.float32)
    expr_std = jax.random.uniform(ks[5], (n_expr,), jnp.float32, 0.5, 1.5)

    mean = shape_mean + expr_mean                                    # (V, 3)
    basis = jnp.concatenate(
        [shape_basis * shape_std, expr_basis * expr_std], axis=-1
    )                                                                # (V, 3, C)
    basis = jnp.transpose(basis, (2, 0, 1))                          # (C, V, 3)
    return mean.astype(jnp.float32), basis.astype(jnp.float32)


if __name__ == "__main__":
    key = jax.random.PRNGKey(0)
    k_p1, k_c1, k_p2, k_c2, k_c3 = jax.random.split(key, 5)

    # Case 1: tiny shapes, f32 basis (exact numerics), single ragged block.
    V, K = 16, 3
    mean1, basis1 = build_morphable_params(k_p1, V=V, K=K, n_shape=4, n_expr=4)
    C1 = basis1.shape[0]
    coeffs1 = jax.random.normal(k_c1, (2, C1), jnp.float32)
    prep1 = prepare_morphable(mean1, basis1, basis_dtype=jnp.float32)
    out1 = jax.block_until_ready(morphable_forward(coeffs1, prep1))
    ref1 = mean1[None] + jnp.einsum("fc,cvk->fvk", coeffs1, basis1)
    assert out1.shape == (2, V, K) and out1.dtype == jnp.float32
    assert jnp.allclose(out1, ref1, atol=1e-5, rtol=1e-5)

    # Case 2: f32, non-trivial grid with ragged last blocks on both axes and a
    # ragged C (12 -> padded 16): V*3=300 -> 3 N tiles, F=20 -> 3 frame tiles.
    V2, F2 = 100, 20
    mean2, basis2 = build_morphable_params(k_p2, V=V2, K=K, n_shape=6, n_expr=6)
    C2 = basis2.shape[0]
    coeffs2 = jax.random.normal(k_c2, (F2, C2), jnp.float32)
    prep2_f32 = prepare_morphable(mean2, basis2, basis_dtype=jnp.float32)
    out2 = jax.block_until_ready(
        morphable_forward(coeffs2, prep2_f32, tile_n=128, tile_m=8))
    ref2 = mean2[None] + jnp.einsum("fc,cvk->fvk", coeffs2, basis2)
    assert out2.shape == (F2, V2, K)
    assert jnp.allclose(out2, ref2, atol=1e-5, rtol=1e-5)

    # Case 3: default perf config (bf16 basis stream, f32 accumulate).
    coeffs3 = jax.random.normal(k_c3, (5, C2), jnp.float32)
    prep2_bf16 = prepare_morphable(mean2, basis2)  # default bf16
    out3 = jax.block_until_ready(morphable_forward(coeffs3, prep2_bf16))
    ref3 = mean2[None] + jnp.einsum("fc,cvk->fvk", coeffs3, basis2)
    assert out3.shape == (5, V2, K) and out3.dtype == jnp.float32
    assert jnp.allclose(out3, ref3, atol=1e-1, rtol=5e-2)

    print("KERNEL_OK")
</pallas_src>

<mosaic_0001>
module attributes {stable_mosaic.version = 11 : i64} {
  func.func @_morphable_kernel(%arg0: i32, %arg1: i32, %arg2: memref<8x8xf32, #tpu.memory_space<vmem>>, %arg3: memref<8x128xf32, #tpu.memory_space<vmem>>, %arg4: memref<1x128xf32, #tpu.memory_space<vmem>>, %arg5: memref<8x128xf32, #tpu.memory_space<vmem>>) attributes {dimension_semantics = [#tpu.dimension_semantics<parallel>, #tpu.dimension_semantics<arbitrary>], iteration_bounds = array<i64: 1, 1>, scalar_prefetch = 0 : i64, scratch_operands = 0 : i64, tpu.core_type = #tpu.core_type<tc>, window_params = [{transform_indices = @transform_0, window_bounds = array<i64: 8, 8>}, {transform_indices = @transform_1, window_bounds = array<i64: 8, 128>}, {transform_indices = @transform_2, window_bounds = array<i64: 1, 128>}, {transform_indices = @transform_3, window_bounds = array<i64: 8, 128>}]} {
    %c0 = arith.constant 0 : index
    %c0_0 = arith.constant 0 : index
    %0 = vector.load %arg2[%c0, %c0_0] : memref<8x8xf32, #tpu.memory_space<vmem>>, vector<8x8xf32>
    %c0_1 = arith.constant 0 : index
    %c0_2 = arith.constant 0 : index
    %1 = vector.load %arg3[%c0_1, %c0_2] : memref<8x128xf32, #tpu.memory_space<vmem>>, vector<8x128xf32>
    %cst = arith.constant dense<0.000000e+00> : vector<8x128xf32>
    %2 = tpu.matmul %0, %1, %cst {dimension_numbers = #tpu.dot_dimension_numbers<[1], [0], [0], [1], [0, 0, 1, 1], [], []>} : vector<8x8xf32>, vector<8x128xf32>, vector<8x128xf32> -> vector<8x128xf32>
    %c0_3 = arith.constant 0 : index
    %c0_4 = arith.constant 0 : index
    %3 = vector.load %arg4[%c0_3, %c0_4] : memref<1x128xf32, #tpu.memory_space<vmem>>, vector<1x128xf32>
    %4 = vector.broadcast %3 : vector<1x128xf32> to vector<8x128xf32>
    %5 = arith.addf %2, %4 : vector<8x128xf32>
    %c0_5 = arith.constant 0 : index
    %c0_6 = arith.constant 0 : index
    %6 = vector.load %arg5[%c0_5, %c0_6] : memref<8x128xf32, #tpu.memory_space<vmem>>, vector<8x128xf32>
    tpu.vector_store %arg5[%c0_5, %c0_6], %5 {strides = array<i32>} : memref<8x128xf32, #tpu.memory_space<vmem>>, vector<8x128xf32>,
    return
  }
  func.func @transform_0(%arg0: i32, %arg1: i32) -> (i32, i32) {
    %c0_i32 = arith.constant 0 : i32
    %c0_i32_0 = arith.constant 0 : i32
    return %arg1, %c0_i32 : i32, i32
  }
  func.func @transform_1(%arg0: i32, %arg1: i32) -> (i32, i32) {
    %c0_i32 = arith.constant 0 : i32
    %c0_i32_0 = arith.constant 0 : i32
    return %c0_i32, %arg0 : i32, i32
  }
  func.func @transform_2(%arg0: i32, %arg1: i32) -> (i32, i32) {
    %c0_i32 = arith.constant 0 : i32
    %c0_i32_0 = arith.constant 0 : i32
    return %c0_i32, %arg0 : i32, i32
  }
  func.func @transform_3(%arg0: i32, %arg1: i32) -> (i32, i32) {
    %c0_i32 = arith.constant 0 : i32
    return %arg1, %arg0 : i32, i32
  }
}

</mosaic_0001>

<llo_original>
// kernel: _morphable_forward_impl.1
$region0: #{_morphable_forward_impl.1}
  #allocation0 [shape = 'u32[]', space=smem, size = 0x4, offset = 0x4, fixed_abs, tag = 'smem constant byte address 0x4 - core index']
  #allocation1 [shape = 'u32[144,128]{1,0:T(1,128)}', space=vmem, size = 0x12000, scoped, tag = 'internal scratch']
  %s0 = inlined_call_operand.hbm [shape: f32[2,8], index: 0, kind: input, shape index: {}]
  %s1 = inlined_call_operand.hbm [shape: f32[8,48], index: 1, kind: input, shape index: {}]
  %s2 = inlined_call_operand.vmem [shape: f32[1,48], index: 2, kind: input, shape index: {}]
  %s3 = inlined_call_operand.vmem [shape: f32[2,48], index: 3, kind: output, shape index: {}]
  %s4 = sld [smem:[#allocation0]]
  $region60: #{_morphable_forward_impl.1} parent=0
    _
  %s6 = ssub.s32 1, %s4
  %s7 = scalar_select 0, %s6, %s4
  $region1: #{_morphable_forward_impl.1} parent=0
    #allocation2 [shape = 'u8[4096]{0}', space=vmem, size = 0x1000, scoped, tag = 'input window, operand 0, single buffered']
    #allocation3 [shape = 's32[1]{0}', space=sflag, size = 0x4, scoped, tag = 'scoped memory for _morphable_forward_impl.1']
    #allocation4 [shape = 'u8[4096]{0}', space=vmem, size = 0x1000, scoped, tag = 'input window, operand 1, single buffered']
    #allocation5 [shape = 's32[1]{0}', space=sflag, size = 0x4, scoped, tag = 'scoped memory for _morphable_forward_impl.1']
    #allocation6 [shape = 'u8[4096]{0}', space=vmem, size = 0x1000, scoped, tag = 'output window, operand 0, single buffered']
    %8 = vsyncpa [#allocation3], 0
    %9 = vsyncpa [#allocation5], 0
    // Predicated region
    $region2: #{_morphable_forward_impl.1} parent=1 // pred_check
      _
    $region3: #{_morphable_forward_impl.1} parent=1 // pred_check_branch
      %11 = sbr.rel (0) target = $region5
    $region4: #{_morphable_forward_impl.1} parent=1 // pred_region
      %s13 = ssub.s32 128, 32
      %14 = vsyncadd [#allocation3], %s13
      %s15 = sshll.u32 [#allocation2], 4
      %s16 = int_to_ptr.vmem [resolvable:$true] %s15
      %21 = dma.hbm_to_vmem [thread:$0]  %s0, 32, %s16, [#allocation3], 32, 32, 2
    $region5: #{_morphable_forward_impl.1} parent=1 // pred_fallthru
      _
    // Predicated region
    $region6: #{_morphable_forward_impl.1} parent=1 // pred_check
      _
    $region7: #{_morphable_forward_impl.1} parent=1 // pred_check_branch
      %23 = sbr.rel (0) target = $region9
    $region8: #{_morphable_forward_impl.1} parent=1 // pred_region
      %s25 = ssub.s32 128, 128
      %26 = vsyncadd [#allocation5], %s25
      %s28 = sshll.u32 [#allocation4], 4
      %s29 = int_to_ptr.vmem [resolvable:$true] %s28
      %31 = dma.hbm_to_vmem [thread:$0]  %s1, 128, %s29, [#allocation5]
    $region9: #{_morphable_forward_impl.1} parent=1 // pred_fallthru
      _
    // Predicated region
    $region10: #{_morphable_forward_impl.1} parent=1 // pred_check
      _
    $region11: #{_morphable_forward_impl.1} parent=1 // pred_check_branch
      %33 = sbr.rel (0) target = $region13
    $region12: #{_morphable_forward_impl.1} parent=1 // pred_region
      _
    $region13: #{_morphable_forward_impl.1} parent=1 // pred_fallthru
      _
    // Predicated region
    $region14: #{_morphable_forward_impl.1} parent=1 // pred_check
      _
    $region15: #{_morphable_forward_impl.1} parent=1 // pred_check_branch
      %35 = sbr.rel (0) target = $region17
    $region16: #{_morphable_forward_impl.1} parent=1 // pred_region
      %36 = dma.done [#allocation3], 128
    $region17: #{_morphable_forward_impl.1} parent=1 // pred_fallthru
      _
    // Predicated region
    $region18: #{_morphable_forward_impl.1} parent=1 // pred_check
      _
    $region19: #{_morphable_forward_impl.1} parent=1 // pred_check_branch
      %38 = sbr.rel (0) target = $region21
    $region20: #{_morphable_forward_impl.1} parent=1 // pred_region
      %39 = dma.done [#allocation5], 128
    $region21: #{_morphable_forward_impl.1} parent=1 // pred_fallthru
      _
    %v40 = vld [vmem:[#allocation2] sm:$0xff]
    %v41 = vld [vmem:[#allocation4] sm:$0xff]
    %v42 = vld [vmem:[%s2] sm:$0x1]
    %v44 = vlaneseq
    %v45 = vshrl.u32 %v44, 7
    %v46 = vsub.s32 0, %v45
    %v47 = vrot.slane %v42, %v46
    %vm49 = vcmask 64512
    %v51 = vsel %vm49, %v40, 0
    %53 = vmatprep.subr.mxu0 0.0
    %54 = vmatpush1.msra.mxu0 %v41
    %55 = vmatprep.subr.mxu0 0.0
    %56 = vmatpush1.msra.mxu0 0.0
    %57 = vmatprep.subr.mxu0 0.0
    %58 = vmatpush1.msra.mxu0 0.0
    %59 = vmatprep.subr.mxu0 0.0
    %60 = vmatpush1.msra.mxu0 0.0
    %61 = vmatprep.subr.mxu0 0.0
    %62 = vmatpush1.msra.mxu0 0.0
    %63 = vmatprep.subr.mxu0 0.0
    %64 = vmatpush1.msra.mxu0 0.0
    %65 = vmatprep.subr.mxu0 0.0
    %66 = vmatpush1.msra.mxu0 0.0
    %67 = vmatprep.subr.mxu0 0.0
    %68 = vmatpush1.msra.mxu0 0.0
    %69 = vmatprep.subr.mxu0 0.0
    %70 = vmatpush1.msra.mxu0 0.0
    %71 = vmatprep.subr.mxu0 0.0
    %72 = vmatpush1.msra.mxu0 0.0
    %73 = vmatprep.subr.mxu0 0.0
    %74 = vmatpush1.msra.mxu0 0.0
    %75 = vmatprep.subr.mxu0 0.0
    %76 = vmatpush1.msra.mxu0 0.0
    %77 = vmatprep.subr.mxu0 0.0
    %78 = vmatpush1.msra.mxu0 0.0
    %79 = vmatprep.subr.mxu0 0.0
    %80 = vmatpush1.msra.mxu0 0.0
    %81 = vmatprep.subr.mxu0 0.0
    %82 = vmatpush1.msra.mxu0 0.0
    %83 = vmatprep.subr.mxu0 0.0
    %84 = vmatpush1.msra.mxu0 0.0
    %85 = vmatprep.subr.mxu0 0.0
    %86 = vmatpush1.msra.mxu0 0.0
    %87 = vmatprep.subr.mxu0 0.0
    %88 = vmatpush1.msra.mxu0 0.0
    %89 = vmatprep.subr.mxu0 0.0
    %90 = vmatpush1.msra.mxu0 0.0
    %91 = vmatprep.subr.mxu0 0.0
    %92 = vmatpush1.msra.mxu0 0.0
    %93 = vmatprep.subr.mxu0 0.0
    %94 = vmatpush1.msra.mxu0 0.0
    %95 = vmatprep.subr.mxu0 0.0
    %96 = vmatpush1.msra.mxu0 0.0
    %97 = vmatprep.subr.mxu0 0.0
    %98 = vmatpush1.msra.mxu0 0.0
    %99 = vmatprep.subr.mxu0 0.0
    %100 = vmatpush1.msra.mxu0 0.0
    %101 = vmatprep.subr.mxu0 0.0
    %102 = vmatpush1.msra.mxu0 0.0
    %103 = vmatprep.subr.mxu0 0.0
    %104 = vmatpush1.msra.mxu0 0.0
    %105 = vmatprep.subr.mxu0 0.0
    %106 = vmatpush1.msra.mxu0 0.0
    %107 = vmatprep.subr.mxu0 0.0
    %108 = vmatpush1.msra.mxu0 0.0
    %109 = vmatprep.subr.mxu0 0.0
    %110 = vmatpush1.msra.mxu0 0.0
    %111 = vmatprep.subr.mxu0 0.0
    %112 = vmatpush1.msra.mxu0 0.0
    %113 = vmatprep.subr.mxu0 0.0
    %114 = vmatpush1.msra.mxu0 0.0
    %115 = vmatprep.subr.mxu0 0.0
    %116 = vmatpush1.msra.mxu0 0.0
    %117 = vmatprep.mubr.f32.mxu0 0.0
    %118 = vmatmul.mubr.f32.gmra.mrb[0].mxu0 %v51
    %v119 = vpop.f32.mrb[0].mxu0
    %v120 = vadd.f32 %v47, %v119
    %v121 = vpop.f32.mrb[0].mxu0
    %122 = vdwg.mxu0
    %123 = vst [vmem:[#allocation6] sm:$0xff] %v120
    // Predicated region
    $region22: #{_morphable_forward_impl.1} parent=1 // pred_check
      _
    $region23: #{_morphable_forward_impl.1} parent=1 // pred_check_branch
      %125 = sbr.rel (0) target = $region25
    $region24: #{_morphable_forward_impl.1} parent=1 // pred_region
      // Predicated region
      $region26: #{_morphable_forward_impl.1} parent=24 // pred_check
        _
      $region27: #{_morphable_forward_impl.1} parent=24 // pred_check_branch
        %127 = sbr.rel (0) target = $region29
      $region28: #{_morphable_forward_impl.1} parent=24 // pred_region
        // Predicated region
        $region30: #{_morphable_forward_impl.1} parent=28 // pred_check
          _
        $region31: #{_morphable_forward_impl.1} parent=28 // pred_check_branch
          %129 = sbr.rel target = $region33
        $region32: #{_morphable_forward_impl.1} parent=28 // pred_region
          // Predicated region
          $region45: #{_morphable_forward_impl.1} parent=32 // pred_check
            _
          $region46: #{_morphable_forward_impl.1} parent=32 // pred_check_branch
            %144 = sbr.rel (0) target = $region48
          $region47: #{_morphable_forward_impl.1} parent=32 // pred_region
            loop: start=0, step=1, limit=1
            $region49: #{_morphable_forward_impl.1} parent=47 // loop_pre_header
              _
            $region50: #{_morphable_forward_impl.1} parent=47 // loop_header
              %s147 = sphi 0, %s151
              %p148 = scmp.ge.s32.totalorder %s147, 1
              %s152 = sphi [#allocation6], [#allocation6]
              %s153 = sphi %s3, %s3
            $region51: #{_morphable_forward_impl.1} parent=47 // loop_header_branch
              %150 = sbr.rel (%p148) target = $region55
            $region52: #{_morphable_forward_impl.1} parent=47 // loop_body
              %v154 = vld [vmem:[%s152] sm:$0x3]
              %155 = vst [vmem:[%s153] sm:$0x3] %v154
            $region53: #{_morphable_forward_impl.1} parent=47 // loop_footer
              %s151 = sadd.s32 1, %s147
            $region54: #{_morphable_forward_impl.1} parent=47 // loop_footer_branch
              %146 = sbr.rel target = $region50
            $region55: #{_morphable_forward_impl.1} parent=47 // loop_exit
              _
          $region48: #{_morphable_forward_impl.1} parent=32 // pred_fallthru
            _
        $region33: #{_morphable_forward_impl.1} parent=28 // pred_fallthru
          _
        // Predicated region
        $region34: #{_morphable_forward_impl.1} parent=28 // pred_check
          _
        $region35: #{_morphable_forward_impl.1} parent=28 // pred_check_branch
          %131 = sbr.rel (0) target = $region37
        $region36: #{_morphable_forward_impl.1} parent=28 // pred_region
          loop: start=0, step=1, limit=1
          $region38: #{_morphable_forward_impl.1} parent=36 // loop_pre_header
            _
          $region39: #{_morphable_forward_impl.1} parent=36 // loop_header
            %s134 = sphi 0, %s138
            %p135 = scmp.ge.s32.totalorder %s134, 1
            %s139 = sphi [#allocation6], [#allocation6]
            %s140 = sphi %s3, %s3
          $region40: #{_morphable_forward_impl.1} parent=36 // loop_header_branch
            %137 = sbr.rel (%p135) target = $region44
          $region41: #{_morphable_forward_impl.1} parent=36 // loop_body
            %v141 = vld [vmem:[%s139] sm:$0x3]
            %142 = vst [vmem:[%s140] sm:$0x3] %v141
          $region42: #{_morphable_forward_impl.1} parent=36 // loop_footer
            %s138 = sadd.s32 1, %s134
          $region43: #{_morphable_forward_impl.1} parent=36 // loop_footer_branch
            %133 = sbr.rel target = $region39
          $region44: #{_morphable_forward_impl.1} parent=36 // loop_exit
            _
        $region37: #{_morphable_forward_impl.1} parent=28 // pred_fallthru
          _
      $region29: #{_morphable_forward_impl.1} parent=24 // pred_fallthru
        _
      %156 = vnop
    $region25: #{_morphable_forward_impl.1} parent=1 // pred_fallthru
      _
    // Predicated region
    $region56: #{_morphable_forward_impl.1} parent=1 // pred_check
      _
    $region57: #{_morphable_forward_impl.1} parent=1 // pred_check_branch
      %158 = sbr.rel (0) target = $region59
    $region58: #{_morphable_forward_impl.1} parent=1 // pred_region
      _
    $region59: #{_morphable_forward_impl.1} parent=1 // pred_fallthru
      _
    %159 = vsyncpa [#allocation3], 1
    %160 = vsyncpa [#allocation5], 1

</llo_original>
